<compile_context>
chip_gen: v5e
topology: v5e:2x2
jax: 0.10.0
libtpu: 0.0.40
codegen_flags: <defaults>
</compile_context>

<pallas_src>
import functools

import jax
import jax.numpy as jnp
from jax import lax
from jax.experimental import pallas as pl
from jax.experimental.pallas import tpu as pltpu

_EPS = 1e-12  # matches torch.nn.functional.normalize default eps


# ----------------------------------------------------------------------------
# Pallas kernel: query-normalization + cosine similarity + fused top-1 argmax.
# Keys arrive already L2-normalized (done once, outside the hot path).
# ----------------------------------------------------------------------------
def _prompt_match_kernel(q_ref, kn_ref, sim_ref, idx_ref):
    q = q_ref[...].astype(jnp.float32)            # (TB, D)
    k_n = kn_ref[...].astype(jnp.float32)         # (P, D)  pre-normalized

    # F.normalize(q, dim=1): q / max(||q||, eps)  ==  q * rsqrt(max(sumsq, eps^2))
    # (rsqrt is a single EUP op; avoids sqrt + full-precision divide on the VALU)
    sumsq = jnp.sum(q * q, axis=1, keepdims=True)
    inv_q = lax.rsqrt(jnp.maximum(sumsq, _EPS * _EPS))
    q_n = q * inv_q

    # einsum('bj,kj->bk', q_n, k_n): contract dim 1 of both operands directly
    # (no .T / XLU transpose), f32 MXU accumulation.
    sim = lax.dot_general(
        q_n, k_n,
        dimension_numbers=(((1,), (1,)), ((), ())),
        preferred_element_type=jnp.float32)
    sim_ref[...] = sim                             # (TB, P)

    # Fused top-1 (first-occurrence argmax over the pool axis).
    pool = sim.shape[1]
    m = jnp.max(sim, axis=1, keepdims=True)
    ids = lax.broadcasted_iota(jnp.int32, sim.shape, 1)
    cand = jnp.where(sim >= m, ids, pool)
    idx_ref[...] = jnp.min(cand, axis=1, keepdims=True).astype(jnp.int32)


def _pick_batch_tile(B):
    # Shard large batches across a parallel grid axis (uses both TensorCores on
    # v7x); tiny batches go through as a single full block (block == full dim
    # is always legal w.r.t. the (8,128) constraint).
    if B >= 256 and B % 128 == 0:
        return 128
    return B


@jax.jit
def prompt_match(x_querry, K_n):
    """Returns (cos_sim (B,P) f32, top-1 indices (B,1) int32)."""
    B, D = x_querry.shape
    P, D2 = K_n.shape
    assert D == D2
    tb = _pick_batch_tile(B)
    grid = (B // tb,)

    cost = pl.CostEstimate(
        flops=2 * B * P * D + 4 * B * D,
        transcendentals=B,
        bytes_accessed=4 * (B * D + P * D + B * P + B),
    )

    sim, idx = pl.pallas_call(
        _prompt_match_kernel,
        out_shape=(
            jax.ShapeDtypeStruct((B, P), jnp.float32),
            jax.ShapeDtypeStruct((B, 1), jnp.int32),
        ),
        grid=grid,
        in_specs=[
            pl.BlockSpec((tb, D), lambda i: (i, 0)),
            pl.BlockSpec((P, D), lambda i: (0, 0)),
        ],
        out_specs=(
            pl.BlockSpec((tb, P), lambda i: (i, 0)),
            pl.BlockSpec((tb, 1), lambda i: (i, 0)),
        ),
        compiler_params=pltpu.CompilerParams(
            dimension_semantics=("parallel",)),
        cost_estimate=cost,
    )(x_querry, K_n)
    return sim, idx


# ----------------------------------------------------------------------------
# Helpers.
# ----------------------------------------------------------------------------
def _l2_normalize(x, axis=1):
    # torch F.normalize semantics: x / max(||x||_2, eps)
    n = jnp.sqrt(jnp.sum(x * x, axis=axis, keepdims=True))
    return x / jnp.maximum(n, _EPS)


# ----------------------------------------------------------------------------
# DualPrompt module re-implemented in JAX (parameters built deterministically).
# ----------------------------------------------------------------------------
class DualPrompt:
    def __init__(self, emb_d, n_tasks, prompt_param, key_dim=768, seed=0):
        self.task_count = 0
        self.emb_d = emb_d
        self.key_d = key_dim
        self.n_tasks = n_tasks
        self._init_smart(emb_d, prompt_param)

        key = jax.random.PRNGKey(seed)

        # tensor_prompt(..., ortho=False) -> nn.init.uniform_ -> U[0, 1)
        self.params = {}
        for g in self.g_layers:
            key, sub = jax.random.split(key)
            self.params[f"g_p_{g}"] = jax.random.uniform(
                sub, (self.g_p_length, emb_d), dtype=jnp.float32)
        for e in self.e_layers:
            key, sub_p, sub_k = jax.random.split(key, 3)
            self.params[f"e_p_{e}"] = jax.random.uniform(
                sub_p, (self.e_pool_size, self.e_p_length, emb_d),
                dtype=jnp.float32)
            k_raw = jax.random.uniform(
                sub_k, (self.e_pool_size, self.key_d), dtype=jnp.float32)
            self.params[f"e_k_{e}"] = k_raw
            # Keys are parameters -> pre-normalize once, outside the hot path.
            # (Forward-only module here; if keys were being trained this would
            # be recomputed whenever the keys change.)
            self.params[f"e_k_{e}_n"] = _l2_normalize(k_raw, axis=1)

    def _init_smart(self, emb_d, prompt_param):
        self.top_k = 1
        self.task_id_bootstrap = True
        self.g_layers = [0, 1]
        self.e_layers = [2, 3, 4]
        self.g_p_length = int(prompt_param[2])
        self.e_p_length = int(prompt_param[1])
        self.e_pool_size = int(prompt_param[0])

    def process_task_count(self):
        self.task_count += 1

    def forward(self, x_querry, l, x_block, train=False, task_id=None):
        loss = 0

        e_valid = False
        if l in self.e_layers:
            e_valid = True
            B, C = x_querry.shape
            p = self.params[f"e_p_{l}"]
            K_n = self.params[f"e_k_{l}_n"]            # pre-normalized keys

            # --- fused Pallas hot path: normalize(q) @ K_n^T + top-1 argmax --
            cos_sim, k_idx = prompt_match(x_querry, K_n)   # (B,P), (B,1) int32

            if train:
                if self.task_id_bootstrap:
                    loss = jnp.sum(1.0 - cos_sim[:, task_id])
                    # p[task_id].expand(B, -1, -1) -> (B, e_p_length, emb_d)
                    P_ = jnp.broadcast_to(
                        p[task_id][None, :, :],
                        (B, self.e_p_length, self.emb_d))
                else:
                    # Mirrors torch `cos_sim[:, k_idx]` advanced indexing with
                    # k_idx of shape (B,1) -> (B,B,1) gather, then sum.
                    # TODO(synk): likely-intended per-row selection would be
                    # jnp.take_along_axis(cos_sim, k_idx, axis=1); kept
                    # torch-faithful (path unused since task_id_bootstrap=True).
                    loss = jnp.sum(1.0 - jnp.take(cos_sim, k_idx, axis=1))
                    P_ = jnp.take(p, k_idx, axis=0)        # (B,1,L,E)
            else:
                # torch.topk(cos_sim, 1).indices -> fused in-kernel argmax
                P_ = jnp.take(p, k_idx, axis=0)            # (B,1,L,E)

            i = int(self.e_p_length / 2)
            if train and self.task_id_bootstrap:
                Ek = P_[:, :i, :].reshape((B, -1, self.emb_d))
                Ev = P_[:, i:, :].reshape((B, -1, self.emb_d))
            else:
                Ek = P_[:, :, :i, :].reshape((B, -1, self.emb_d))
                Ev = P_[:, :, i:, :].reshape((B, -1, self.emb_d))

        g_valid = False
        if l in self.g_layers:
            g_valid = True
            j = int(self.g_p_length / 2)
            p = self.params[f"g_p_{l}"]
            B = x_querry.shape[0]
            P_ = jnp.broadcast_to(p[None, :, :],
                                  (B, self.g_p_length, self.emb_d))
            Gk = P_[:, :j, :]
            Gv = P_[:, j:, :]

        if e_valid and g_valid:
            Pk = jnp.concatenate((Ek, Gk), axis=1)
            Pv = jnp.concatenate((Ev, Gv), axis=1)
            p_return = [Pk, Pv]
        elif e_valid:
            p_return = [Ek, Ev]
        elif g_valid:
            p_return = [Gk, Gv]
            loss = 0
        else:
            p_return = None
            loss = 0

        if train:
            return p_return, loss, x_block
        else:
            return p_return, 0, x_block


# ----------------------------------------------------------------------------
# Demo / smoke test.
# ----------------------------------------------------------------------------
if __name__ == "__main__":
    # Small shapes consistent with the module:
    #   batch B=2, key_dim=128, emb_d=32,
    #   prompt_param = [e_pool_size=8, e_p_length=8, g_p_length=8]
    B, KEY_D, EMB_D = 2, 128, 32
    prompt_param = [8, 8, 8]

    module = DualPrompt(emb_d=EMB_D, n_tasks=3, prompt_param=prompt_param,
                        key_dim=KEY_D, seed=0)

    key = jax.random.PRNGKey(0)
    k1, k2 = jax.random.split(key)
    x_querry = jax.random.normal(k1, (B, KEY_D), dtype=jnp.float32)
    x_block = jax.random.normal(k2, (B, 8, EMB_D), dtype=jnp.float32)

    # Sanity check: fused kernel (cos_sim, argmax) vs pure-JAX reference.
    K_raw = module.params["e_k_2"]
    K_n = module.params["e_k_2_n"]
    cs, idx = prompt_match(x_querry, K_n)
    jax.block_until_ready((cs, idx))

    qn = x_querry / jnp.maximum(
        jnp.linalg.norm(x_querry, axis=1, keepdims=True), _EPS)
    kn = K_raw / jnp.maximum(
        jnp.linalg.norm(K_raw, axis=1, keepdims=True), _EPS)
    cs_ref = qn @ kn.T
    assert jnp.allclose(cs, cs_ref, atol=2e-3, rtol=2e-3), "cos_sim mismatch"
    idx_ref = jnp.argmax(cs_ref, axis=1)[:, None].astype(jnp.int32)
    assert jnp.array_equal(idx, idx_ref), "argmax mismatch"

    # Eval path, e-layer (l=2): [Ek, Ev] each (B, e_p_length/2, emb_d)
    (Ek, Ev), loss0, xb = module.forward(x_querry, 2, x_block, train=False)
    jax.block_until_ready((Ek, Ev))
    assert Ek.shape == (B, 4, EMB_D) and Ev.shape == (B, 4, EMB_D)

    # Eval path, g-layer (l=0): [Gk, Gv] each (B, g_p_length/2, emb_d)
    (Gk, Gv), _, _ = module.forward(x_querry, 0, x_block, train=False)
    jax.block_until_ready((Gk, Gv))
    assert Gk.shape == (B, 4, EMB_D) and Gv.shape == (B, 4, EMB_D)

    # Train path with task_id bootstrap, e-layer (l=3)
    (Ek_t, Ev_t), loss_t, _ = module.forward(
        x_querry, 3, x_block, train=True, task_id=0)
    jax.block_until_ready((Ek_t, Ev_t, loss_t))
    assert Ek_t.shape == (B, 4, EMB_D)
    assert loss_t.shape == ()

    print("KERNEL_OK")
</pallas_src>

<mosaic_0001>
module attributes {stable_mosaic.version = 11 : i64} {
  func.func @_prompt_match_kernel(%arg0: i32, %arg1: memref<2x128xf32, #tpu.memory_space<vmem>>, %arg2: memref<8x128xf32, #tpu.memory_space<vmem>>, %arg3: memref<2x8xf32, #tpu.memory_space<vmem>>, %arg4: memref<2x1xi32, #tpu.memory_space<vmem>>) attributes {dimension_semantics = [#tpu.dimension_semantics<parallel>], iteration_bounds = array<i64: 1>, scalar_prefetch = 0 : i64, scratch_operands = 0 : i64, tpu.core_type = #tpu.core_type<tc>, window_params = [{transform_indices = @transform_0, window_bounds = array<i64: 2, 128>}, {pipeline_mode = #tpu.pipeline_mode<synchronous>, transform_indices = @transform_1, window_bounds = array<i64: 8, 128>}, {transform_indices = @transform_2, window_bounds = array<i64: 2, 8>}, {transform_indices = @transform_3, window_bounds = array<i64: 2, 1>}]} {
    %c0 = arith.constant 0 : index
    %c0_0 = arith.constant 0 : index
    %0 = vector.load %arg1[%c0, %c0_0] : memref<2x128xf32, #tpu.memory_space<vmem>>, vector<2x128xf32>
    %c0_1 = arith.constant 0 : index
    %c0_2 = arith.constant 0 : index
    %1 = vector.load %arg2[%c0_1, %c0_2] : memref<8x128xf32, #tpu.memory_space<vmem>>, vector<8x128xf32>
    %2 = arith.mulf %0, %0 : vector<2x128xf32>
    %cst = arith.constant dense<0.000000e+00> : vector<2xf32>
    %3 = vector.multi_reduction <add>, %2, %cst [1] : vector<2x128xf32> to vector<2xf32>
    %4 = vector.shape_cast %3 : vector<2xf32> to vector<2x1xf32>
    %cst_3 = arith.constant 1.000000e-24 : f32
    %5 = vector.broadcast %cst_3 : f32 to vector<2x1xf32>
    %6 = arith.maximumf %4, %5 : vector<2x1xf32>
    %7 = math.rsqrt %6 : vector<2x1xf32>
    %8 = vector.broadcast %7 : vector<2x1xf32> to vector<2x128xf32>
    %9 = arith.mulf %0, %8 : vector<2x128xf32>
    %cst_4 = arith.constant dense<0.000000e+00> : vector<2x8xf32>
    %10 = tpu.matmul %9, %1, %cst_4 {dimension_numbers = #tpu.dot_dimension_numbers<[1], [1], [0], [0], [0, 0, 1, 0], [], []>} : vector<2x128xf32>, vector<8x128xf32>, vector<2x8xf32> -> vector<2x8xf32>
    %c0_5 = arith.constant 0 : index
    %c0_6 = arith.constant 0 : index
    %11 = vector.load %arg3[%c0_5, %c0_6] : memref<2x8xf32, #tpu.memory_space<vmem>>, vector<2x8xf32>
    tpu.vector_store %arg3[%c0_5, %c0_6], %10 {strides = array<i32>} : memref<2x8xf32, #tpu.memory_space<vmem>>, vector<2x8xf32>,
    %cst_7 = arith.constant dense<0xFF800000> : vector<2xf32>
    %12 = vector.multi_reduction <maximumf>, %10, %cst_7 [1] : vector<2x8xf32> to vector<2xf32>
    %13 = vector.shape_cast %12 : vector<2xf32> to vector<2x1xf32>
    %14 = tpu.iota {dimensions = array<i32: 1>} : vector<2x8xi32>
    %15 = vector.broadcast %13 : vector<2x1xf32> to vector<2x8xf32>
    %16 = arith.cmpf oge, %10, %15 : vector<2x8xf32>
    %c8_i32 = arith.constant 8 : i32
    %17 = vector.broadcast %c8_i32 : i32 to vector<2x8xi32>
    %18 = arith.select %16, %14, %17 : vector<2x8xi1>, vector<2x8xi32>
    %cst_8 = arith.constant dense<2147483647> : vector<2xi32>
    %19 = vector.multi_reduction <minsi>, %18, %cst_8 [1] : vector<2x8xi32> to vector<2xi32>
    %20 = vector.shape_cast %19 : vector<2xi32> to vector<2x1xi32>
    %c0_9 = arith.constant 0 : index
    %c0_10 = arith.constant 0 : index
    %21 = vector.load %arg4[%c0_9, %c0_10] : memref<2x1xi32, #tpu.memory_space<vmem>>, vector<2x1xi32>
    tpu.vector_store %arg4[%c0_9, %c0_10], %20 {strides = array<i32>} : memref<2x1xi32, #tpu.memory_space<vmem>>, vector<2x1xi32>,
    return
  }
  func.func @transform_0(%arg0: i32) -> (i32, i32) {
    %c0_i32 = arith.constant 0 : i32
    %c0_i32_0 = arith.constant 0 : i32
    return %arg0, %c0_i32 : i32, i32
  }
  func.func @transform_1(%arg0: i32) -> (i32, i32) {
    %c0_i32 = arith.constant 0 : i32
    %c0_i32_0 = arith.constant 0 : i32
    %c0_i32_1 = arith.constant 0 : i32
    return %c0_i32, %c0_i32_0 : i32, i32
  }
  func.func @transform_2(%arg0: i32) -> (i32, i32) {
    %c0_i32 = arith.constant 0 : i32
    %c0_i32_0 = arith.constant 0 : i32
    return %arg0, %c0_i32 : i32, i32
  }
  func.func @transform_3(%arg0: i32) -> (i32, i32) {
    %c0_i32 = arith.constant 0 : i32
    %c0_i32_0 = arith.constant 0 : i32
    return %arg0, %c0_i32 : i32, i32
  }
}

</mosaic_0001>

<llo_original>
// kernel: prompt_match.1
$region0: #{prompt_match.1}
  #allocation0 [shape = 'u32[]', space=smem, size = 0x4, offset = 0x4, fixed_abs, tag = 'smem constant byte address 0x4 - core index']
  #allocation1 [shape = 'u32[72,128]{1,0:T(1,128)}', space=vmem, size = 0x9000, scoped, tag = 'internal scratch']
  %s0 = inlined_call_operand.hbm [shape: f32[2,128], index: 0, kind: input, shape index: {}]
  %s1 = inlined_call_operand.hbm [shape: f32[8,128], index: 1, kind: input, shape index: {}]
  %s2 = inlined_call_operand.hbm [shape: f32[2,8], index: 2, kind: output, shape index: {0}]
  %s3 = inlined_call_operand.vmem [shape: s32[2,1], index: 3, kind: output, shape index: {1}]
  %4 = xla_tuple %s2, %s3
  %s5 = sld [smem:[#allocation0]]
  $region34: #{prompt_match.1} parent=0
    _
  %s7 = ssub.s32 1, %s5
  %s8 = scalar_select 0, %s7, %s5
  $region1: #{prompt_match.1} parent=0
    #allocation2 [shape = 'u8[1024]{0}', space=vmem, size = 0x400, scoped, tag = 'input window, operand 0, single buffered']
    #allocation3 [shape = 's32[1]{0}', space=sflag, size = 0x4, scoped, tag = 'scoped memory for prompt_match.1']
    #allocation4 [shape = 's32[1]{0}', space=sflag, size = 0x4, scoped, tag = 'scoped memory for prompt_match.1']
    #allocation5 [shape = 'u8[4096]{0}', space=vmem, size = 0x1000, scoped, tag = 'input window, operand 1, single buffered']
    #allocation6 [shape = 's32[1]{0}', space=sflag, size = 0x4, scoped, tag = 'scoped memory for prompt_match.1']
    #allocation7 [shape = 'u8[1024]{0}', space=vmem, size = 0x400, scoped, tag = 'output window, operand 0, single buffered']
    %9 = vsyncpa [#allocation3], 0
    %10 = vsyncpa [#allocation6], 0
    %11 = vsyncpa [#allocation4], 0
    // Predicated region
    $region2: #{prompt_match.1} parent=1 // pred_check
      _
    $region3: #{prompt_match.1} parent=1 // pred_check_branch
      %13 = sbr.rel (0) target = $region5
    $region4: #{prompt_match.1} parent=1 // pred_region
      %15 = vsyncadd [#allocation3], 0
      %s17 = sshll.u32 %s0, 4
      %s18 = int_to_ptr.hbm [resolvable:$true] %s17
      %s19 = sshll.u32 [#allocation2], 4
      %s20 = int_to_ptr.vmem [resolvable:$true] %s19
      %22 = dma.hbm_to_vmem [thread:$0]  %s18, 32, %s20, [#allocation3]
    $region5: #{prompt_match.1} parent=1 // pred_fallthru
      _
    // Predicated region
    $region6: #{prompt_match.1} parent=1 // pred_check
      _
    $region7: #{prompt_match.1} parent=1 // pred_check_branch
      %24 = sbr.rel (0) target = $region9
    $region8: #{prompt_match.1} parent=1 // pred_region
      %26 = vsyncadd [#allocation6], 0
      %s28 = sshll.u32 %s1, 4
      %s29 = int_to_ptr.hbm [resolvable:$true] %s28
      %s30 = sshll.u32 [#allocation5], 4
      %s31 = int_to_ptr.vmem [resolvable:$true] %s30
      %33 = dma.hbm_to_vmem [thread:$0]  %s29, 128, %s31, [#allocation6]
    $region9: #{prompt_match.1} parent=1 // pred_fallthru
      _
    // Predicated region
    $region10: #{prompt_match.1} parent=1 // pred_check
      _
    $region11: #{prompt_match.1} parent=1 // pred_check_branch
      %35 = sbr.rel (0) target = $region13
    $region12: #{prompt_match.1} parent=1 // pred_region
      %37 = dma.done [#allocation3], 32
    $region13: #{prompt_match.1} parent=1 // pred_fallthru
      _
    // Predicated region
    $region14: #{prompt_match.1} parent=1 // pred_check
      _
    $region15: #{prompt_match.1} parent=1 // pred_check_branch
      %39 = sbr.rel (0) target = $region17
    $region16: #{prompt_match.1} parent=1 // pred_region
      %41 = dma.done [#allocation6], 128
    $region17: #{prompt_match.1} parent=1 // pred_fallthru
      _
    %v42 = vld [vmem:[#allocation2] sm:$0x3]
    %v43 = vld [vmem:[#allocation5] sm:$0xff]
    %v44 = vmul.f32 %v42, %v42
    %vm45 = vcmask 1041408
    %v46 = vsel %vm45, %v44, 0.0
    %47 = vadd.xlane.f32.xlu0 %v46
    %v48 = vpop.xlane.xlu0 %47
    %v49 = vmax.f32 %v48, 1e-24
    %v50 = vrsqrt.pop %v49
    %v51 = vmul.f32 %v50, %v49
    %v52 = vmul.f32 %v51, %v50
    %v53 = vmul.f32 0.5, %v52
    %v54 = vsub.f32 1.5, %v53
    %v55 = vmul.f32 %v50, %v54
    %vm56 = vweird.f32 %v49
    %vm57 = vweird.f32 %v50
    %vm58 = vmor %vm56, %vm57
    %v59 = vsel %vm58, %v50, %v55
    %v60 = vmul.f32 %v42, %v59
    %61 = vmatpush.xpose.msra.mxu0 0.0
    %62 = vmatpush.xpose.msra.mxu0 0.0
    %63 = vmatpush.xpose.msra.mxu0 0.0
    %64 = vmatpush.xpose.msra.mxu0 0.0
    %65 = vmatpush.xpose.msra.mxu0 0.0
    %66 = vmatpush.xpose.msra.mxu0 0.0
    %67 = vmatpush.xpose.msra.mxu0 0.0
    %68 = vmatpush.xpose.msra.mxu0 0.0
    %69 = vmatpush.xpose.msra.mxu0 0.0
    %70 = vmatpush.xpose.msra.mxu0 0.0
    %71 = vmatpush.xpose.msra.mxu0 0.0
    %72 = vmatpush.xpose.msra.mxu0 0.0
    %73 = vmatpush.xpose.msra.mxu0 0.0
    %74 = vmatpush.xpose.msra.mxu0 0.0
    %75 = vmatpush.xpose.msra.mxu0 0.0
    %76 = vmatpush.xpose.msra.mxu0 %v43
    %77 = vmatmul.f32.gmra.mxu0 %v60
    %v78 = vpop.f32.mrf.mxu0
    %v79 = vadd.f32 0.0, %v78
    %80 = vdwg.mxu0
    %vm81 = vcmask 58368
    %82 = vst.msk [vmem:[#allocation7] sm:$0x3] %vm81, %v79
    %v83 = vsel %vm81, %v79, -inf
    %84 = vmax.xlane.f32.xlu0 %v83
    %v85 = vpop.xlane.xlu0 %84
    %v86 = vlaneseq
    %v87 = vand.u32 %v86, 127
    %vm88 = vcmp.ge.f32.partialorder %v79, %v85
    %v89 = vsel %vm88, %v87, 8
    %v90 = vsel %vm81, %v89, 2147483647
    %v91 = vand.u32 %v90, 65535
    %v92 = vshra.s32 %v90, 16
    %v93 = vcvt.s32.f32 %v91
    %v94 = vcvt.s32.f32 %v92
    %95 = vmin.xlane.f32.xlu0 %v94
    %v96 = vpop.xlane.xlu0 %95
    %vm97 = vcmp.eq.f32.partialorder %v94, %v96
    %v98 = vsel %vm97, %v93, inf
    %99 = vmin.xlane.f32.xlu0 %v98
    %v100 = vpop.xlane.xlu0 %99
    %v101 = vcvt.f32.s32 %v100
    %v102 = vcvt.f32.s32 %v96
    %v103 = vshll.u32 %v102, 16
    %v104 = vadd.s32 %v103, %v101
    %vm105 = vcmask 1024
    %106 = vst.msk [vmem:[%s3] sm:$0x3] %vm105, %v104
    // Predicated region
    $region18: #{prompt_match.1} parent=1 // pred_check
      _
    $region19: #{prompt_match.1} parent=1 // pred_check_branch
      %108 = sbr.rel (0) target = $region21
    $region20: #{prompt_match.1} parent=1 // pred_region
      %110 = vsyncadd [#allocation4], 0
      %s112 = sshll.u32 [#allocation7], 4
      %s113 = int_to_ptr.vmem [resolvable:$true] %s112
      %s114 = sshll.u32 %s2, 4
      %s115 = int_to_ptr.hbm [resolvable:$true] %s114
      %117 = dma.vmem_to_hbm [thread:$0]  %s113, 32, %s115, [#allocation4]
    $region21: #{prompt_match.1} parent=1 // pred_fallthru
      _
    // Predicated region
    $region22: #{prompt_match.1} parent=1 // pred_check
      _
    $region23: #{prompt_match.1} parent=1 // pred_check_branch
      %119 = sbr.rel (0) target = $region25
    $region24: #{prompt_match.1} parent=1 // pred_region
      _
    $region25: #{prompt_match.1} parent=1 // pred_fallthru
      _
    // Predicated region
    $region26: #{prompt_match.1} parent=1 // pred_check
      _
    $region27: #{prompt_match.1} parent=1 // pred_check_branch
      %121 = sbr.rel (0) target = $region29
    $region28: #{prompt_match.1} parent=1 // pred_region
      %123 = dma.done [#allocation4], 32
    $region29: #{prompt_match.1} parent=1 // pred_fallthru
      _
    // Predicated region
    $region30: #{prompt_match.1} parent=1 // pred_check
      _
    $region31: #{prompt_match.1} parent=1 // pred_check_branch
      %125 = sbr.rel (0) target = $region33
    $region32: #{prompt_match.1} parent=1 // pred_region
      _
    $region33: #{prompt_match.1} parent=1 // pred_fallthru
      _
    %126 = vsyncpa [#allocation3], 1
    %127 = vsyncpa [#allocation6], 1
    %128 = vsyncpa [#allocation4], 1

</llo_original>
